<compile_context>
chip_gen: v6e
topology: v6e:2x2x1
jax: 0.10.0
libtpu: 0.0.40
codegen_flags: <defaults>
</compile_context>

<pallas_src>
import functools

import jax
import jax.numpy as jnp
from jax import lax
from jax.experimental import pallas as pl
from jax.experimental.pallas import tpu as pltpu


def _mixup_ce_kernel(lam_ref, logits_ref, tgt_ref, out_ref, acc_ref, *,
                     batch_size, tiles_per_core, mixup, needs_mask):
    # lam_ref:    SMEM (2,)            f32   [lam_a, lam_b]
    # logits_ref: VMEM (TB, C)         native dtype (cast to f32 per tile)
    # tgt_ref:    VMEM (TB, 1 or 2)    int32 (col 0 = target, col 1 = target_b)
    # out_ref:    VMEM (1, 8, 128)     f32   per-core partial sum (broadcast)
    # acc_ref:    VMEM (TB, 1)         f32   per-core running per-row sums
    c = pl.program_id(0)          # partial-sum slot ("parallel" -> megacore)
    i = pl.program_id(1)          # batch tile within this slot ("arbitrary")

    @pl.when(i == 0)
    def _init():
        acc_ref[...] = jnp.zeros_like(acc_ref)

    x = logits_ref[...].astype(jnp.float32)   # per-tile cast (bf16 stays bf16 in HBM)
    TB, C = x.shape

    # numerically stable per-row log-sum-exp
    m = jnp.max(x, axis=1, keepdims=True)                               # (TB, 1)
    lse = m + jnp.log(jnp.sum(jnp.exp(x - m), axis=1, keepdims=True))   # (TB, 1)

    # masked selects of x itself (no full-width weight tensor, no extra mul/add)
    class_ids = lax.broadcasted_iota(jnp.int32, (TB, C), 1)
    xa = jnp.sum(jnp.where(class_ids == tgt_ref[:, 0:1], x, 0.0),
                 axis=1, keepdims=True)                                 # (TB, 1)

    lam_a = lam_ref[0]
    if mixup:
        lam_b = lam_ref[1]
        xb = jnp.sum(jnp.where(class_ids == tgt_ref[:, 1:2], x, 0.0),
                     axis=1, keepdims=True)                             # (TB, 1)
        per_row = (lam_a + lam_b) * lse - (lam_a * xa + lam_b * xb)
    else:
        per_row = lam_a * (lse - xa)          # wrapper passes lam=[1,0] here

    if needs_mask:
        # unclamped global tile index (the index_map clamps the DMA; here we
        # mask any rows that fall past the true batch, incl. duplicated tiles)
        tile_idx = c * tiles_per_core + i
        row_ids = tile_idx * TB + lax.broadcasted_iota(jnp.int32, (TB, 1), 0)
        per_row = jnp.where(row_ids < batch_size, per_row, jnp.float32(0.0))

    acc_ref[...] += per_row                   # cheap (TB,1) vector add per step

    @pl.when(i == pl.num_programs(1) - 1)
    def _finalize():
        partial = jnp.sum(acc_ref[...])       # single cross-sublane reduce per core
        out_ref[...] = jnp.full((1, 8, 128), partial, dtype=jnp.float32)


def _choose_tile_rows(batch, classes, dtype, tile_rows=None):
    """Dtype-aware batch-tile height: rounded to the dtype's sublane multiple,
    sized so the (double-buffered) logits block plus f32 temporaries fit a
    32 MiB scoped-VMEM budget on every generation (incl. v7x's 64 MiB VMEM)."""
    itemsize = jnp.dtype(dtype).itemsize
    sublane = {4: 8, 2: 16, 1: 32}.get(itemsize, 8)
    if tile_rows is None:
        max_elems = (512 * 1024) if itemsize >= 4 else (1024 * 1024)
        tile_rows = max(1, max_elems // max(classes, 1))
    if tile_rows >= batch:
        return batch                          # full-dim block: no divisibility constraint
    return max(sublane, (tile_rows // sublane) * sublane)


def mixup_classification_loss(prediction, target, target_b=None,
                              lam_a=1.0, lam_b=1.0, tile_rows=None):
    """Equivalent of MixupClassificationLoss('crossentropy', reduction='mean')."""
    B, C = prediction.shape
    mixup = target_b is not None

    if mixup:
        lam = jnp.stack([jnp.asarray(lam_a, jnp.float32),
                         jnp.asarray(lam_b, jnp.float32)])
        tgt = jnp.stack([target.astype(jnp.int32),
                         target_b.astype(jnp.int32)], axis=1)            # (B, 2)
    else:
        # module ignores lam_a/lam_b when target_b is None
        lam = jnp.asarray([1.0, 0.0], dtype=jnp.float32)
        tgt = target.astype(jnp.int32).reshape(B, 1)                     # (B, 1)

    TB = _choose_tile_rows(B, C, prediction.dtype, tile_rows)
    total_tiles = pl.cdiv(B, TB)
    num_cores = 2 if total_tiles >= 2 else 1      # megacore split; harmless on 1-TC chips
    tiles_per_core = pl.cdiv(total_tiles, num_cores)
    padded_tiles = num_cores * tiles_per_core
    needs_mask = (padded_tiles * TB) != B
    last_tile = total_tiles - 1

    if padded_tiles != total_tiles:
        def data_map(c, i):
            return (jnp.minimum(c * tiles_per_core + i, last_tile), 0)
    else:
        def data_map(c, i):
            return (c * tiles_per_core + i, 0)

    kernel = functools.partial(
        _mixup_ce_kernel, batch_size=B, tiles_per_core=tiles_per_core,
        mixup=mixup, needs_mask=needs_mask)

    itemsize = jnp.dtype(prediction.dtype).itemsize
    partials = pl.pallas_call(
        kernel,
        out_shape=jax.ShapeDtypeStruct((num_cores, 8, 128), jnp.float32),
        grid_spec=pltpu.PrefetchScalarGridSpec(
            num_scalar_prefetch=0,
            grid=(num_cores, tiles_per_core),
            in_specs=[
                pl.BlockSpec(memory_space=pltpu.MemorySpace.SMEM),       # lam (2,)
                pl.BlockSpec((TB, C), data_map),                         # logits tile
                pl.BlockSpec((TB, tgt.shape[1]), data_map),              # targets tile
            ],
            out_specs=pl.BlockSpec((1, 8, 128), lambda c, i: (c, 0, 0)),  # per-core partial
            scratch_shapes=[pltpu.VMEM((TB, 1), jnp.float32)],            # per-core accumulator
        ),
        compiler_params=pltpu.CompilerParams(
            dimension_semantics=("parallel", "arbitrary"),
            vmem_limit_bytes=32 * 1024 * 1024,
        ),
        cost_estimate=pl.CostEstimate(
            flops=8 * B * C,
            transcendentals=B * C,
            bytes_accessed=(B * C * itemsize + tgt.size * 4 + 8
                            + num_cores * 8 * 128 * 4),
        ),
    )(lam, prediction, tgt)

    return jnp.sum(partials[:, 0, 0]) * (1.0 / B)


def _reference_loss(prediction, target, target_b, lam_a, lam_b):
    logp = jax.nn.log_softmax(prediction.astype(jnp.float32), axis=1)

    def ce(t):
        return -jnp.mean(jnp.take_along_axis(logp, t.astype(jnp.int32)[:, None], axis=1))

    return lam_a * ce(target) + lam_b * ce(target_b)


if __name__ == "__main__":
    B, C = 8, 32
    key = jax.random.PRNGKey(0)
    k1, k2, k3 = jax.random.split(key, 3)

    prediction = jax.random.normal(k1, (B, C), dtype=jnp.float32)
    target = jax.random.randint(k2, (B,), 0, C, dtype=jnp.int32)
    target_b = jax.random.randint(k3, (B,), 0, C, dtype=jnp.int32)
    lam_a, lam_b = 0.7, 0.3

    # mixup path, f32 logits (single tile, single partial)
    loss = jax.block_until_ready(
        mixup_classification_loss(prediction, target, target_b, lam_a, lam_b))
    ref = _reference_loss(prediction, target, target_b, lam_a, lam_b)
    assert jnp.allclose(loss, ref, rtol=1e-5, atol=1e-5), (loss, ref)

    # target_b=None path (specialized kernel variant, no second target column)
    loss_single = jax.block_until_ready(mixup_classification_loss(prediction, target))
    ref_single = _reference_loss(prediction, target, target, 1.0, 0.0)
    assert jnp.allclose(loss_single, ref_single, rtol=1e-5, atol=1e-5), (loss_single, ref_single)

    # bf16 logits: no wrapper upcast, cast happens per-tile inside the kernel
    pred_bf16 = prediction.astype(jnp.bfloat16)
    loss_bf = jax.block_until_ready(
        mixup_classification_loss(pred_bf16, target, target_b, lam_a, lam_b))
    ref_bf = _reference_loss(pred_bf16, target, target_b, lam_a, lam_b)
    assert jnp.allclose(loss_bf, ref_bf, rtol=1e-4, atol=1e-4), (loss_bf, ref_bf)

    # multi-tile path with padded / clamped tail (B=20, TB=8 -> 3 tiles over
    # 2 partial-sum slots, last virtual tile clamped+masked)
    B2 = 20
    kk = jax.random.split(jax.random.PRNGKey(1), 3)
    pred2 = jax.random.normal(kk[0], (B2, C), dtype=jnp.float32)
    t2a = jax.random.randint(kk[1], (B2,), 0, C, dtype=jnp.int32)
    t2b = jax.random.randint(kk[2], (B2,), 0, C, dtype=jnp.int32)
    loss2 = jax.block_until_ready(
        mixup_classification_loss(pred2, t2a, t2b, 0.4, 0.6, tile_rows=8))
    ref2 = _reference_loss(pred2, t2a, t2b, 0.4, 0.6)
    assert jnp.allclose(loss2, ref2, rtol=1e-5, atol=1e-5), (loss2, ref2)

    # exactly aligned multi-tile path (B=32, TB=8 -> 4 tiles, 2 per slot, no mask)
    B3 = 32
    kk3 = jax.random.split(jax.random.PRNGKey(2), 3)
    pred3 = jax.random.normal(kk3[0], (B3, C), dtype=jnp.float32)
    t3a = jax.random.randint(kk3[1], (B3,), 0, C, dtype=jnp.int32)
    t3b = jax.random.randint(kk3[2], (B3,), 0, C, dtype=jnp.int32)
    loss3 = jax.block_until_ready(
        mixup_classification_loss(pred3, t3a, t3b, 0.25, 0.75, tile_rows=8))
    ref3 = _reference_loss(pred3, t3a, t3b, 0.25, 0.75)
    assert jnp.allclose(loss3, ref3, rtol=1e-5, atol=1e-5), (loss3, ref3)

    print("KERNEL_OK")
</pallas_src>

<mosaic_0001>
module attributes {stable_mosaic.version = 11 : i64} {
  func.func @_mixup_ce_kernel(%arg0: i32, %arg1: i32, %arg2: memref<2xf32, #tpu.memory_space<smem>>, %arg3: memref<8x32xf32, #tpu.memory_space<vmem>>, %arg4: memref<8x2xi32, #tpu.memory_space<vmem>>, %arg5: memref<1x8x128xf32, #tpu.memory_space<vmem>>, %arg6: memref<8x1xf32, #tpu.memory_space<vmem>>) attributes {dimension_semantics = [#tpu.dimension_semantics<parallel>, #tpu.dimension_semantics<arbitrary>], iteration_bounds = array<i64: 1, 1>, scalar_prefetch = 0 : i64, scratch_operands = 1 : i64, tpu.core_type = #tpu.core_type<tc>, window_params = [{transform_indices = @transform_0, window_bounds = array<i64: 2>}, {transform_indices = @transform_1, window_bounds = array<i64: 8, 32>}, {transform_indices = @transform_2, window_bounds = array<i64: 8, 2>}, {transform_indices = @transform_3, window_bounds = array<i64: 1, 8, 128>}]} {
    %c0_i32 = arith.constant 0 : i32
    %0 = arith.cmpi eq, %arg1, %c0_i32 : i32
    %1 = arith.extui %0 : i1 to i32
    %c0_i32_0 = arith.constant 0 : i32
    %2 = arith.cmpi ne, %1, %c0_i32_0 : i32
    scf.if %2 {
      %cst_18 = arith.constant 0.000000e+00 : f32
      %45 = vector.broadcast %cst_18 : f32 to vector<8x1xf32>
      %c0_19 = arith.constant 0 : index
      %c0_20 = arith.constant 0 : index
      %46 = vector.load %arg6[%c0_19, %c0_20] : memref<8x1xf32, #tpu.memory_space<vmem>>, vector<8x1xf32>
      tpu.vector_store %arg6[%c0_19, %c0_20], %45 {strides = array<i32>} : memref<8x1xf32, #tpu.memory_space<vmem>>, vector<8x1xf32>,
    } else {
    }
    %c0 = arith.constant 0 : index
    %c0_1 = arith.constant 0 : index
    %3 = vector.load %arg3[%c0, %c0_1] : memref<8x32xf32, #tpu.memory_space<vmem>>, vector<8x32xf32>
    %cst = arith.constant dense<0xFF800000> : vector<8xf32>
    %4 = vector.multi_reduction <maximumf>, %3, %cst [1] : vector<8x32xf32> to vector<8xf32>
    %5 = vector.shape_cast %4 : vector<8xf32> to vector<8x1xf32>
    %6 = vector.broadcast %5 : vector<8x1xf32> to vector<8x32xf32>
    %7 = arith.subf %3, %6 : vector<8x32xf32>
    %8 = math.exp %7 : vector<8x32xf32>
    %cst_2 = arith.constant dense<0.000000e+00> : vector<8xf32>
    %9 = vector.multi_reduction <add>, %8, %cst_2 [1] : vector<8x32xf32> to vector<8xf32>
    %10 = vector.shape_cast %9 : vector<8xf32> to vector<8x1xf32>
    %11 = math.log %10 : vector<8x1xf32>
    %12 = arith.addf %5, %11 : vector<8x1xf32>
    %13 = tpu.iota {dimensions = array<i32: 1>} : vector<8x32xi32>
    %c0_3 = arith.constant 0 : index
    %c0_4 = arith.constant 0 : index
    %14 = vector.load %arg4[%c0_3, %c0_4] : memref<8x2xi32, #tpu.memory_space<vmem>>, vector<8x1xi32>
    %15 = vector.broadcast %14 : vector<8x1xi32> to vector<8x32xi32>
    %16 = arith.cmpi eq, %13, %15 : vector<8x32xi32>
    %cst_5 = arith.constant 0.000000e+00 : f32
    %17 = vector.broadcast %cst_5 : f32 to vector<8x32xf32>
    %18 = arith.select %16, %3, %17 : vector<8x32xi1>, vector<8x32xf32>
    %cst_6 = arith.constant dense<0.000000e+00> : vector<8xf32>
    %19 = vector.multi_reduction <add>, %18, %cst_6 [1] : vector<8x32xf32> to vector<8xf32>
    %20 = vector.shape_cast %19 : vector<8xf32> to vector<8x1xf32>
    %c0_7 = arith.constant 0 : index
    %21 = memref.load %arg2[%c0_7] : memref<2xf32, #tpu.memory_space<smem>>
    %c1 = arith.constant 1 : index
    %22 = memref.load %arg2[%c1] : memref<2xf32, #tpu.memory_space<smem>>
    %c0_8 = arith.constant 0 : index
    %c1_9 = arith.constant 1 : index
    %23 = vector.load %arg4[%c0_8, %c1_9] : memref<8x2xi32, #tpu.memory_space<vmem>>, vector<8x1xi32>
    %24 = vector.broadcast %23 : vector<8x1xi32> to vector<8x32xi32>
    %25 = arith.cmpi eq, %13, %24 : vector<8x32xi32>
    %cst_10 = arith.constant 0.000000e+00 : f32
    %26 = vector.broadcast %cst_10 : f32 to vector<8x32xf32>
    %27 = arith.select %25, %3, %26 : vector<8x32xi1>, vector<8x32xf32>
    %cst_11 = arith.constant dense<0.000000e+00> : vector<8xf32>
    %28 = vector.multi_reduction <add>, %27, %cst_11 [1] : vector<8x32xf32> to vector<8xf32>
    %29 = vector.shape_cast %28 : vector<8xf32> to vector<8x1xf32>
    %30 = arith.addf %21, %22 : f32
    %31 = vector.broadcast %30 : f32 to vector<8x1xf32>
    %32 = arith.mulf %31, %12 : vector<8x1xf32>
    %33 = vector.broadcast %21 : f32 to vector<8x1xf32>
    %34 = arith.mulf %33, %20 : vector<8x1xf32>
    %35 = vector.broadcast %22 : f32 to vector<8x1xf32>
    %36 = arith.mulf %35, %29 : vector<8x1xf32>
    %37 = arith.addf %34, %36 : vector<8x1xf32>
    %38 = arith.subf %32, %37 : vector<8x1xf32>
    %c0_12 = arith.constant 0 : index
    %c0_13 = arith.constant 0 : index
    %39 = vector.load %arg6[%c0_12, %c0_13] : memref<8x1xf32, #tpu.memory_space<vmem>>, vector<8x1xf32>
    %40 = arith.addf %39, %38 : vector<8x1xf32>
    %c0_14 = arith.constant 0 : index
    %c0_15 = arith.constant 0 : index
    %41 = vector.load %arg6[%c0_14, %c0_15] : memref<8x1xf32, #tpu.memory_space<vmem>>, vector<8x1xf32>
    tpu.vector_store %arg6[%c0_14, %c0_15], %40 {strides = array<i32>} : memref<8x1xf32, #tpu.memory_space<vmem>>, vector<8x1xf32>,
    %c0_i32_16 = arith.constant 0 : i32
    %42 = arith.cmpi eq, %arg1, %c0_i32_16 : i32
    %43 = arith.extui %42 : i1 to i32
    %c0_i32_17 = arith.constant 0 : i32
    %44 = arith.cmpi ne, %43, %c0_i32_17 : i32
    scf.if %44 {
      %c0_18 = arith.constant 0 : index
      %c0_19 = arith.constant 0 : index
      %45 = vector.load %arg6[%c0_18, %c0_19] : memref<8x1xf32, #tpu.memory_space<vmem>>, vector<8x1xf32>
      %46 = vector.shape_cast %45 : vector<8x1xf32> to vector<1x8x1xf32>
      %cst_20 = arith.constant dense<0.000000e+00> : vector<1xf32>
      %47 = vector.multi_reduction <add>, %46, %cst_20 [1, 2] : vector<1x8x1xf32> to vector<1xf32>
      %48 = vector.shape_cast %47 : vector<1xf32> to vector<1x1x1xf32>
      %49 = vector.extract %48[0, 0, 0] : f32 from vector<1x1x1xf32>
      %50 = vector.broadcast %49 : f32 to vector<1x8x128xf32>
      %c0_21 = arith.constant 0 : index
      %c0_22 = arith.constant 0 : index
      %c0_23 = arith.constant 0 : index
      %51 = vector.load %arg5[%c0_21, %c0_22, %c0_23] : memref<1x8x128xf32, #tpu.memory_space<vmem>>, vector<1x8x128xf32>
      tpu.vector_store %arg5[%c0_21, %c0_22, %c0_23], %50 {strides = array<i32>} : memref<1x8x128xf32, #tpu.memory_space<vmem>>, vector<1x8x128xf32>,
    } else {
    }
    return
  }
  func.func @transform_0(%arg0: i32, %arg1: i32) -> i32 {
    %c0_i32 = arith.constant 0 : i32
    %c0_i32_0 = arith.constant 0 : i32
    return %c0_i32 : i32
  }
  func.func @transform_1(%arg0: i32, %arg1: i32) -> (i32, i32) {
    %c1_i32 = arith.constant 1 : i32
    %0 = arith.muli %arg0, %c1_i32 : i32
    %1 = arith.addi %0, %arg1 : i32
    %c0_i32 = arith.constant 0 : i32
    %c0_i32_0 = arith.constant 0 : i32
    return %1, %c0_i32 : i32, i32
  }
  func.func @transform_2(%arg0: i32, %arg1: i32) -> (i32, i32) {
    %c1_i32 = arith.constant 1 : i32
    %0 = arith.muli %arg0, %c1_i32 : i32
    %1 = arith.addi %0, %arg1 : i32
    %c0_i32 = arith.constant 0 : i32
    %c0_i32_0 = arith.constant 0 : i32
    return %1, %c0_i32 : i32, i32
  }
  func.func @transform_3(%arg0: i32, %arg1: i32) -> (i32, i32, i32) {
    %c0_i32 = arith.constant 0 : i32
    %c0_i32_0 = arith.constant 0 : i32
    %c0_i32_1 = arith.constant 0 : i32
    return %arg0, %c0_i32, %c0_i32_0 : i32, i32, i32
  }
}

</mosaic_0001>

<llo_original>
// kernel: tpu_custom_call.1
$region0: #{tpu_custom_call.1}
  #allocation0 [shape = 'u32[]', space=smem, size = 0x4, offset = 0x4, fixed_abs, tag = 'smem constant byte address 0x4 - core index']
  #allocation1 [shape = 'u32[144,128]{1,0:T(1,128)}', space=vmem, size = 0x12000, scoped, tag = 'internal scratch']
  #allocation2 [shape = 'f32[8,1]{1,0:T(8,128)}', space=vmem, size = 0x1000, scoped, tag = 'scratch operand']
  %s0 = inlined_call_operand.vmem [shape: f32[2], index: 0, kind: input, shape index: {}]
  %s1 = inlined_call_operand.vmem [shape: f32[8,32], index: 1, kind: input, shape index: {}]
  %s2 = inlined_call_operand.vmem [shape: s32[8,2], index: 2, kind: input, shape index: {}]
  %s3 = inlined_call_operand.hbm [shape: f32[1,8,128], index: 3, kind: output, shape index: {}]
  %s4 = sld [smem:[#allocation0]]
  $region34: #{tpu_custom_call.1} parent=0
    _
  %s6 = ssub.s32 1, %s4
  %s7 = scalar_select 0, %s6, %s4
  $region1: #{tpu_custom_call.1} parent=0
    #allocation3 [shape = 'u8[512]{0}', space=smem, size = 0x200, scoped, tag = 'input window, operand 0, single buffered']
    #allocation4 [shape = 's32[1]{0}', space=sflag, size = 0x4, scoped, tag = 'scoped memory for tpu_custom_call.1']
    #allocation5 [shape = 's32[1]{0}', space=sflag, size = 0x4, scoped, tag = 'scoped memory for tpu_custom_call.1']
    #allocation6 [shape = 'u8[4096]{0}', space=vmem, size = 0x1000, scoped, tag = 'output window, operand 0, single buffered']
    %8 = vsyncpa [#allocation5], 0
    %9 = vsyncpa [#allocation4], 0
    // Predicated region
    $region2: #{tpu_custom_call.1} parent=1 // pred_check
      _
    $region3: #{tpu_custom_call.1} parent=1 // pred_check_branch
      %11 = sbr.rel (0) target = $region5
    $region4: #{tpu_custom_call.1} parent=1 // pred_region
      %s13 = ssub.s32 16, 16
      %14 = vsyncadd [#allocation5], %s13
      %s16 = sshll.u32 %s0, 4
      %s17 = int_to_ptr.vmem [resolvable:$true] %s16
      %19 = dma.vmem_to_smem %s17, 16, [#allocation3], [#allocation5]
    $region5: #{tpu_custom_call.1} parent=1 // pred_fallthru
      _
    // Predicated region
    $region6: #{tpu_custom_call.1} parent=1 // pred_check
      _
    $region7: #{tpu_custom_call.1} parent=1 // pred_check_branch
      %21 = sbr.rel (0) target = $region9
    $region8: #{tpu_custom_call.1} parent=1 // pred_region
      %s22 = sadd.s32 0, 0
      %p23 = scmp.lt.s32.totalorder %s22, 0
      %s24 = scalar_select %p23, %s22, 0
      %s25 = smul.addr %s24, 8
      %s26 = scalar_lea.vmem %s1, %s25
      %s27 = sadd.s32 0, 0
    $region9: #{tpu_custom_call.1} parent=1 // pred_fallthru
      _
    // Predicated region
    $region10: #{tpu_custom_call.1} parent=1 // pred_check
      _
    $region11: #{tpu_custom_call.1} parent=1 // pred_check_branch
      %29 = sbr.rel (0) target = $region13
    $region12: #{tpu_custom_call.1} parent=1 // pred_region
      %s30 = sadd.s32 0, 0
      %p31 = scmp.lt.s32.totalorder %s30, 0
      %s32 = scalar_select %p31, %s30, 0
      %s33 = smul.addr %s32, 8
      %s34 = scalar_lea.vmem %s2, %s33
      %s35 = sadd.s32 0, 0
    $region13: #{tpu_custom_call.1} parent=1 // pred_fallthru
      _
    // Predicated region
    $region14: #{tpu_custom_call.1} parent=1 // pred_check
      _
    $region15: #{tpu_custom_call.1} parent=1 // pred_check_branch
      %37 = sbr.rel (0) target = $region17
    $region16: #{tpu_custom_call.1} parent=1 // pred_region
      %38 = dma.done [#allocation5], 16
    $region17: #{tpu_custom_call.1} parent=1 // pred_fallthru
      _
    %39 = sfence
    %s40 = sadd.s32 0, 0
    %p41 = scmp.lt.s32.totalorder %s40, 0
    %s42 = scalar_select %p41, %s40, 0
    %s43 = smul.addr %s42, 8
    %s44 = scalar_lea.vmem %s1, %s43
    %s45 = sadd.s32 0, 0
    %p46 = scmp.lt.s32.totalorder %s45, 0
    %s47 = scalar_select %p46, %s45, 0
    %s48 = smul.addr %s47, 8
    %s49 = scalar_lea.vmem %s2, %s48
    %s50 = sadd.s32 0, 0
    %p51 = scmp.lt.s32.totalorder %s50, 0
    %s52 = scalar_select %p51, %s50, 0
    %s53 = smul.addr %s52, 8
    %s54 = scalar_lea.vmem %s1, %s53
    %s55 = sadd.s32 0, 0
    %s56 = sadd.s32 0, 0
    %p57 = scmp.lt.s32.totalorder %s56, 0
    %s58 = scalar_select %p57, %s56, 0
    %s59 = smul.addr %s58, 8
    %s60 = scalar_lea.vmem %s2, %s59
    %s61 = sadd.s32 0, 0
    %p62 = scmp.eq.s32.totalorder 0, 0
    // Predicated region
    $region18: #{tpu_custom_call.1} parent=1 // pred_check
      %p63 = pneg %p62
    $region19: #{tpu_custom_call.1} parent=1 // pred_check_branch
      %65 = sbr.rel (%p63) target = $region21
    $region20: #{tpu_custom_call.1} parent=1 // pred_region
      %vm66 = vcmask 7168
      %67 = vst.msk [vmem:[#allocation2] sm:$0xff] %vm66, 0.0
    $region21: #{tpu_custom_call.1} parent=1 // pred_fallthru
      _
    %v68 = vld [vmem:[%s54] sm:$0xff]
    %vm69 = vcmask 261120
    %v70 = vsel %vm69, %v68, -inf
    %71 = vmax.xlane.f32.xlu0 %v70
    %v72 = vpop.xlane.xlu0 %71
    %v73 = vsub.f32 %v68, %v72
    %v74 = vmul.f32 %v73, 1.442695
    %v75 = vpow.pop %v74
    %v76 = vsel %vm69, %v75, 0.0
    %77 = vadd.xlane.f32.xlu0 %v76
    %v78 = vpop.xlane.xlu0 %77
    %v79 = vlog2.pop %v78
    %v80 = vmul.f32 %v79, 0.6931472
    %v81 = vadd.f32 %v72, %v80
    %v82 = vlaneseq
    %v83 = vand.u32 %v82, 127
    %v84 = vld [vmem:[%s60] sm:$0xff]
    %85 = vset.pattern.permute.xlu0 0
    %86 = vperm.xlu0 %85, %v84
    %v87 = vpop.permute.xlu0 %86
    %vm88 = vcmp.eq.s32.totalorder %v83, %v87
    %v89 = vsel %vm88, %v68, 0.0
    %v90 = vsel %vm69, %v89, 0.0
    %91 = vadd.xlane.f32.xlu0 %v90
    %v92 = vpop.xlane.xlu0 %91
    %s93 = sld [smem:[#allocation3]]
    %s94 = sld [smem:[#allocation3 + $0x1]]
    %95 = vset.pattern.permute.xlu0 1
    %96 = vperm.xlu0 %95, %v84
    %v97 = vpop.permute.xlu0 %96
    %vm98 = vcmp.eq.s32.totalorder %v83, %v97
    %v99 = vsel %vm98, %v68, 0.0
    %v100 = vsel %vm69, %v99, 0.0
    %101 = vadd.xlane.f32.xlu0 %v100
    %v102 = vpop.xlane.xlu0 %101
    %s103 = sadd.f32 %s93, %s94
    %v104 = vstv %s103
    %v105 = vmul.f32 %v104, %v81
    %v106 = vstv %s93
    %v107 = vmul.f32 %v106, %v92
    %v108 = vstv %s94
    %v109 = vmul.f32 %v108, %v102
    %v110 = vadd.f32 %v107, %v109
    %v111 = vsub.f32 %v105, %v110
    %v112 = vld [vmem:[#allocation2] sm:$0xff]
    %v113 = vadd.f32 %v112, %v111
    %vm114 = vcmask 7168
    %115 = vst.msk [vmem:[#allocation2] sm:$0xff] %vm114, %v113
    // Predicated region
    $region22: #{tpu_custom_call.1} parent=1 // pred_check
      %p116 = pneg %p62
    $region23: #{tpu_custom_call.1} parent=1 // pred_check_branch
      %118 = sbr.rel (%p116) target = $region25
    $region24: #{tpu_custom_call.1} parent=1 // pred_region
      %v119 = vld [vmem:[#allocation2] sm:$0xff]
      %v120 = vsel %vm114, %v119, 0.0
      %121 = vadd.xlane.f32.xlu0 %v120
      %v122 = vpop.xlane.xlu0 %121
      %v123 = vrot.slane %v122, 4
      %v124 = vadd.f32 %v122, %v123
      %v125 = vrot.slane %v124, 2
      %v126 = vadd.f32 %v124, %v125
      %v127 = vrot.slane %v126, 1
      %v128 = vadd.f32 %v126, %v127
      %s129 = vtos %v128
      %v130 = vstv %s129
      %131 = vst [vmem:[#allocation6] sm:$0xff] %v130
    $region25: #{tpu_custom_call.1} parent=1 // pred_fallthru
      _
    // Predicated region
    $region26: #{tpu_custom_call.1} parent=1 // pred_check
      _
    $region27: #{tpu_custom_call.1} parent=1 // pred_check_branch
      %133 = sbr.rel (0) target = $region29
    $region28: #{tpu_custom_call.1} parent=1 // pred_region
      %s135 = ssub.s32 128, 128
      %136 = vsyncadd [#allocation4], %s135
      %s138 = sshll.u32 [#allocation6], 4
      %s139 = int_to_ptr.vmem [resolvable:$true] %s138
      %141 = dma.vmem_to_hbm [thread:$0]  %s139, 128, %s3, [#allocation4]
    $region29: #{tpu_custom_call.1} parent=1 // pred_fallthru
      _
    // Predicated region
    $region30: #{tpu_custom_call.1} parent=1 // pred_check
      _
    $region31: #{tpu_custom_call.1} parent=1 // pred_check_branch
      %143 = sbr.rel (0) target = $region33
    $region32: #{tpu_custom_call.1} parent=1 // pred_region
      %144 = dma.done [#allocation4], 128
    $region33: #{tpu_custom_call.1} parent=1 // pred_fallthru
      _
    %145 = vsyncpa [#allocation4], 1
    %146 = vsyncpa [#allocation5], 1

</llo_original>
